<compile_context>
chip_gen: v6e
topology: v6e:2x2x1
jax: 0.10.0
libtpu: 0.0.40
codegen_flags: <defaults>
</compile_context>

<pallas_src>
import functools

import jax
import jax.numpy as jnp
from jax import lax
from jax.experimental import pallas as pl
from jax.experimental.pallas import tpu as pltpu


def _complex_kernel(a_ref, b_ref, er_ref, ei_ref, out_ref):
    """One grid step scores the whole (padded) batch against one entity tile."""
    a = a_ref[...]           # (Bp, D)   resident:  e1r*relr - e1i*reli
    b = b_ref[...]           # (Bp, D)   resident:  e1r*reli + e1i*relr
    er = er_ref[...]         # (tE, D)   streamed tile of emb_e_real.weight
    ei = ei_ref[...]         # (tE, D)   streamed tile of emb_e_img.weight

    # Contract dim 1 of both operands (RHS is used transposed) -> no relayout.
    dn = (((1,), (1,)), ((), ()))
    pred = lax.dot_general(a, er, dn, preferred_element_type=jnp.float32)
    pred = pred + lax.dot_general(b, ei, dn, preferred_element_type=jnp.float32)
    out_ref[...] = jax.nn.sigmoid(pred).astype(out_ref.dtype)


def _round_up(x, m):
    return -(-x // m) * m


@functools.partial(jax.jit, static_argnames=("tile_e", "stream_dtype"))
def complex_forward(e1, rel, emb_e_real, emb_e_img,
                    emb_rel_real, emb_rel_img, *,
                    tile_e=1024, stream_dtype=jnp.float32):
    """ComplEx scoring: returns sigmoid scores of shape (B, num_entities)."""
    # ---- glue: embedding gathers (torch nn.Embedding lookups + squeeze) ----
    e1 = e1.reshape(-1)
    rel = rel.reshape(-1)
    e1r = jnp.take(emb_e_real, e1, axis=0)      # (B, D)
    e1i = jnp.take(emb_e_img, e1, axis=0)       # (B, D)
    relr = jnp.take(emb_rel_real, rel, axis=0)  # (B, D)
    reli = jnp.take(emb_rel_img, rel, axis=0)   # (B, D)
    # inp_drop: identity in eval mode.

    # ---- fold four bilinear terms into two matmul operands (exact algebra) ----
    a = e1r * relr - e1i * reli                 # pairs with Er^T
    b = e1r * reli + e1i * relr                 # pairs with Ei^T

    B, D = a.shape
    E = emb_e_real.shape[0]
    item = jnp.dtype(stream_dtype).itemsize

    # ---- choose tile / pad to clean (8, 128)-friendly shapes ----
    te = min(int(tile_e), _round_up(E, 128))
    te = max(128, (te // 128) * 128)
    E_pad = _round_up(E, te)
    B_pad = _round_up(B, 8)

    er_w = emb_e_real.astype(stream_dtype)
    ei_w = emb_e_img.astype(stream_dtype)
    if E_pad != E:
        er_w = jnp.pad(er_w, ((0, E_pad - E), (0, 0)))
        ei_w = jnp.pad(ei_w, ((0, E_pad - E), (0, 0)))

    a = a.astype(stream_dtype)
    b = b.astype(stream_dtype)
    if B_pad != B:
        a = jnp.pad(a, ((0, B_pad - B), (0, 0)))
        b = jnp.pad(b, ((0, B_pad - B), (0, 0)))

    grid = (E_pad // te,)

    # Batch vectors resident every step; entity tables stream in (te, D) tiles;
    # output is the matching lane-dense (B_pad, te) slab.
    vec_spec = pl.BlockSpec((B_pad, D), lambda j: (0, 0))
    ent_spec = pl.BlockSpec((te, D), lambda j: (j, 0))
    out_spec = pl.BlockSpec((B_pad, te), lambda j: (0, j))

    # VMEM budget: double-buffered entity tiles + output slabs + resident vecs.
    vmem_need = (2 * 2 * te * D * item          # 2 tables, double-buffered
                 + 2 * B_pad * te * 4           # output slab, double-buffered
                 + 2 * 2 * B_pad * D * item)    # resident a / b
    vmem_limit = int(min(max(2 * vmem_need, 32 * 1024 * 1024),
                         48 * 1024 * 1024))

    cost = pl.CostEstimate(
        flops=2 * 2 * B_pad * D * E_pad,                       # two matmuls
        transcendentals=B_pad * E_pad,                         # sigmoid
        bytes_accessed=(2 * E_pad * D * item                   # entity tables
                        + 2 * B_pad * D * item                 # a, b
                        + B_pad * E_pad * 4),                  # scores out
    )

    scores = pl.pallas_call(
        _complex_kernel,
        out_shape=jax.ShapeDtypeStruct((B_pad, E_pad), jnp.float32),
        grid_spec=pltpu.PrefetchScalarGridSpec(
            num_scalar_prefetch=0,
            grid=grid,
            in_specs=[vec_spec, vec_spec, ent_spec, ent_spec],
            out_specs=out_spec,
        ),
        compiler_params=pltpu.CompilerParams(
            dimension_semantics=("parallel",),
            vmem_limit_bytes=vmem_limit),
        cost_estimate=cost,
    )(a, b, er_w, ei_w)

    return scores[:B, :E]


def _reference(e1, rel, er_w, ei_w, rr_w, ri_w):
    e1r = er_w[e1.reshape(-1)]
    e1i = ei_w[e1.reshape(-1)]
    relr = rr_w[rel.reshape(-1)]
    reli = ri_w[rel.reshape(-1)]
    pred = (jnp.dot(e1r * relr, er_w.T)
            + jnp.dot(e1r * reli, ei_w.T)
            + jnp.dot(e1i * relr, ei_w.T)
            - jnp.dot(e1i * reli, er_w.T))
    return jax.nn.sigmoid(pred)


if __name__ == "__main__":
    # Small synthetic configuration consistent with the module's __init__.
    # Entity count and batch intentionally NOT multiples of the tile sizes to
    # exercise the padding / tail-handling path.
    num_entities = 300
    num_relations = 32
    embedding_dim = 128
    batch = 5

    key = jax.random.PRNGKey(0)
    k1, k2, k3, k4, k5, k6 = jax.random.split(key, 6)

    # Deterministic "xavier-normal"-style init; row 0 zeroed (padding_idx=0).
    def make_emb(k, n, d):
        std = (2.0 / (n + d)) ** 0.5
        w = jax.random.normal(k, (n, d), dtype=jnp.float32) * std
        return w.at[0].set(0.0)

    emb_e_real = make_emb(k1, num_entities, embedding_dim)
    emb_e_img = make_emb(k2, num_entities, embedding_dim)
    emb_rel_real = make_emb(k3, num_relations, embedding_dim)
    emb_rel_img = make_emb(k4, num_relations, embedding_dim)

    e1 = jax.random.randint(k5, (batch, 1), 0, num_entities, dtype=jnp.int32)
    rel = jax.random.randint(k6, (batch, 1), 0, num_relations, dtype=jnp.int32)

    ref = _reference(e1, rel, emb_e_real, emb_e_img,
                     emb_rel_real, emb_rel_img)

    # Exact (f32-streamed) path.
    pred_f32 = complex_forward(e1, rel, emb_e_real, emb_e_img,
                               emb_rel_real, emb_rel_img,
                               tile_e=1024, stream_dtype=jnp.float32)
    jax.block_until_ready(pred_f32)
    assert pred_f32.shape == (batch, num_entities)
    assert jnp.allclose(pred_f32, ref, atol=1e-5, rtol=1e-5)

    # Fast bf16-streamed path (halves HBM traffic on the bandwidth-bound kernel).
    pred_bf16 = complex_forward(e1, rel, emb_e_real, emb_e_img,
                                emb_rel_real, emb_rel_img,
                                tile_e=1024, stream_dtype=jnp.bfloat16)
    jax.block_until_ready(pred_bf16)
    assert pred_bf16.shape == (batch, num_entities)
    assert jnp.allclose(pred_bf16, ref, atol=2e-2, rtol=2e-2)

    print("KERNEL_OK")
</pallas_src>

<mosaic_0001>
module attributes {stable_mosaic.version = 11 : i64} {
  func.func @_complex_kernel(%arg0: i32, %arg1: memref<8x128xf32, #tpu.memory_space<vmem>>, %arg2: memref<8x128xf32, #tpu.memory_space<vmem>>, %arg3: memref<384x128xf32, #tpu.memory_space<vmem>>, %arg4: memref<384x128xf32, #tpu.memory_space<vmem>>, %arg5: memref<8x384xf32, #tpu.memory_space<vmem>>) attributes {dimension_semantics = [#tpu.dimension_semantics<parallel>], iteration_bounds = array<i64: 1>, scalar_prefetch = 0 : i64, scratch_operands = 0 : i64, tpu.core_type = #tpu.core_type<tc>, window_params = [{pipeline_mode = #tpu.pipeline_mode<synchronous>, transform_indices = @transform_0, window_bounds = array<i64: 8, 128>}, {pipeline_mode = #tpu.pipeline_mode<synchronous>, transform_indices = @transform_1, window_bounds = array<i64: 8, 128>}, {transform_indices = @transform_2, window_bounds = array<i64: 384, 128>}, {transform_indices = @transform_3, window_bounds = array<i64: 384, 128>}, {transform_indices = @transform_4, window_bounds = array<i64: 8, 384>}]} {
    %c0 = arith.constant 0 : index
    %c0_0 = arith.constant 0 : index
    %0 = vector.load %arg1[%c0, %c0_0] : memref<8x128xf32, #tpu.memory_space<vmem>>, vector<8x128xf32>
    %c0_1 = arith.constant 0 : index
    %c0_2 = arith.constant 0 : index
    %1 = vector.load %arg2[%c0_1, %c0_2] : memref<8x128xf32, #tpu.memory_space<vmem>>, vector<8x128xf32>
    %c0_3 = arith.constant 0 : index
    %c0_4 = arith.constant 0 : index
    %2 = vector.load %arg3[%c0_3, %c0_4] : memref<384x128xf32, #tpu.memory_space<vmem>>, vector<384x128xf32>
    %c0_5 = arith.constant 0 : index
    %c0_6 = arith.constant 0 : index
    %3 = vector.load %arg4[%c0_5, %c0_6] : memref<384x128xf32, #tpu.memory_space<vmem>>, vector<384x128xf32>
    %cst = arith.constant dense<0.000000e+00> : vector<8x384xf32>
    %4 = tpu.matmul %0, %2, %cst {dimension_numbers = #tpu.dot_dimension_numbers<[1], [1], [0], [0], [0, 0, 1, 0], [], []>} : vector<8x128xf32>, vector<384x128xf32>, vector<8x384xf32> -> vector<8x384xf32>
    %cst_7 = arith.constant dense<0.000000e+00> : vector<8x384xf32>
    %5 = tpu.matmul %1, %3, %cst_7 {dimension_numbers = #tpu.dot_dimension_numbers<[1], [1], [0], [0], [0, 0, 1, 0], [], []>} : vector<8x128xf32>, vector<384x128xf32>, vector<8x384xf32> -> vector<8x384xf32>
    %6 = arith.addf %4, %5 : vector<8x384xf32>
    %7 = arith.negf %6 : vector<8x384xf32>
    %8 = math.exp %7 : vector<8x384xf32>
    %cst_8 = arith.constant 1.000000e+00 : f32
    %9 = vector.broadcast %cst_8 : f32 to vector<8x384xf32>
    %10 = arith.addf %9, %8 : vector<8x384xf32>
    %11 = arith.divf %9, %10 : vector<8x384xf32>
    %c0_9 = arith.constant 0 : index
    %c0_10 = arith.constant 0 : index
    %12 = vector.load %arg5[%c0_9, %c0_10] : memref<8x384xf32, #tpu.memory_space<vmem>>, vector<8x384xf32>
    tpu.vector_store %arg5[%c0_9, %c0_10], %11 {strides = array<i32>} : memref<8x384xf32, #tpu.memory_space<vmem>>, vector<8x384xf32>,
    return
  }
  func.func @transform_0(%arg0: i32) -> (i32, i32) {
    %c0_i32 = arith.constant 0 : i32
    %c0_i32_0 = arith.constant 0 : i32
    %c0_i32_1 = arith.constant 0 : i32
    return %c0_i32, %c0_i32_0 : i32, i32
  }
  func.func @transform_1(%arg0: i32) -> (i32, i32) {
    %c0_i32 = arith.constant 0 : i32
    %c0_i32_0 = arith.constant 0 : i32
    %c0_i32_1 = arith.constant 0 : i32
    return %c0_i32, %c0_i32_0 : i32, i32
  }
  func.func @transform_2(%arg0: i32) -> (i32, i32) {
    %c0_i32 = arith.constant 0 : i32
    %c0_i32_0 = arith.constant 0 : i32
    return %arg0, %c0_i32 : i32, i32
  }
  func.func @transform_3(%arg0: i32) -> (i32, i32) {
    %c0_i32 = arith.constant 0 : i32
    %c0_i32_0 = arith.constant 0 : i32
    return %arg0, %c0_i32 : i32, i32
  }
  func.func @transform_4(%arg0: i32) -> (i32, i32) {
    %c0_i32 = arith.constant 0 : i32
    %c0_i32_0 = arith.constant 0 : i32
    return %c0_i32, %arg0 : i32, i32
  }
}

</mosaic_0001>

<llo_original>
// kernel: complex_forward.1
$region0: #{complex_forward.1}
  #allocation0 [shape = 'u32[]', space=smem, size = 0x4, offset = 0x4, fixed_abs, tag = 'smem constant byte address 0x4 - core index']
  #allocation1 [shape = 'u32[144,128]{1,0:T(1,128)}', space=vmem, size = 0x12000, scoped, tag = 'internal scratch']
  %s0 = inlined_call_operand.vmem [shape: f32[8,128], index: 0, kind: input, shape index: {}]
  %s1 = inlined_call_operand.vmem [shape: f32[8,128], index: 1, kind: input, shape index: {}]
  %s2 = inlined_call_operand.vmem [shape: f32[384,128], index: 2, kind: input, shape index: {}]
  %s3 = inlined_call_operand.vmem [shape: f32[384,128], index: 3, kind: input, shape index: {}]
  %s4 = inlined_call_operand.hbm [shape: f32[8,384], index: 4, kind: output, shape index: {}]
  %s5 = sld [smem:[#allocation0]]
  $region26: #{complex_forward.1} parent=0
    _
  %s7 = ssub.s32 1, %s5
  %s8 = scalar_select 0, %s7, %s5
  $region1: #{complex_forward.1} parent=0
    #allocation2 [shape = 'u8[12288]{0}', space=vmem, size = 0x3000, scoped, tag = 'output window, operand 0, single buffered']
    #allocation3 [shape = 's32[1]{0}', space=sflag, size = 0x4, scoped, tag = 'scoped memory for complex_forward.1']
    %9 = vsyncpa [#allocation3], 0
    // Predicated region
    $region2: #{complex_forward.1} parent=1 // pred_check
      _
    $region3: #{complex_forward.1} parent=1 // pred_check_branch
      %11 = sbr.rel (0) target = $region5
    $region4: #{complex_forward.1} parent=1 // pred_region
      _
    $region5: #{complex_forward.1} parent=1 // pred_fallthru
      _
    // Predicated region
    $region6: #{complex_forward.1} parent=1 // pred_check
      _
    $region7: #{complex_forward.1} parent=1 // pred_check_branch
      %13 = sbr.rel (0) target = $region9
    $region8: #{complex_forward.1} parent=1 // pred_region
      _
    $region9: #{complex_forward.1} parent=1 // pred_fallthru
      _
    // Predicated region
    $region10: #{complex_forward.1} parent=1 // pred_check
      _
    $region11: #{complex_forward.1} parent=1 // pred_check_branch
      %15 = sbr.rel (0) target = $region13
    $region12: #{complex_forward.1} parent=1 // pred_region
      _
    $region13: #{complex_forward.1} parent=1 // pred_fallthru
      _
    // Predicated region
    $region14: #{complex_forward.1} parent=1 // pred_check
      _
    $region15: #{complex_forward.1} parent=1 // pred_check_branch
      %17 = sbr.rel (0) target = $region17
    $region16: #{complex_forward.1} parent=1 // pred_region
      _
    $region17: #{complex_forward.1} parent=1 // pred_fallthru
      _
    %v18 = vld [vmem:[%s0] sm:$0xff]
    %v19 = vld [vmem:[%s1] sm:$0xff]
    %v20 = vld [vmem:[%s2] sm:$0xff]
    %v21 = vld [vmem:[%s2 + $0x8] sm:$0xff]
    %v22 = vld [vmem:[%s2 + $0x10] sm:$0xff]
    %v23 = vld [vmem:[%s2 + $0x18] sm:$0xff]
    %v24 = vld [vmem:[%s2 + $0x20] sm:$0xff]
    %v25 = vld [vmem:[%s2 + $0x28] sm:$0xff]
    %v26 = vld [vmem:[%s2 + $0x30] sm:$0xff]
    %v27 = vld [vmem:[%s2 + $0x38] sm:$0xff]
    %v28 = vld [vmem:[%s2 + $0x40] sm:$0xff]
    %v29 = vld [vmem:[%s2 + $0x48] sm:$0xff]
    %v30 = vld [vmem:[%s2 + $0x50] sm:$0xff]
    %v31 = vld [vmem:[%s2 + $0x58] sm:$0xff]
    %v32 = vld [vmem:[%s2 + $0x60] sm:$0xff]
    %v33 = vld [vmem:[%s2 + $0x68] sm:$0xff]
    %v34 = vld [vmem:[%s2 + $0x70] sm:$0xff]
    %v35 = vld [vmem:[%s2 + $0x78] sm:$0xff]
    %v36 = vld [vmem:[%s2 + $0x80] sm:$0xff]
    %v37 = vld [vmem:[%s2 + $0x88] sm:$0xff]
    %v38 = vld [vmem:[%s2 + $0x90] sm:$0xff]
    %v39 = vld [vmem:[%s2 + $0x98] sm:$0xff]
    %v40 = vld [vmem:[%s2 + $0xa0] sm:$0xff]
    %v41 = vld [vmem:[%s2 + $0xa8] sm:$0xff]
    %v42 = vld [vmem:[%s2 + $0xb0] sm:$0xff]
    %v43 = vld [vmem:[%s2 + $0xb8] sm:$0xff]
    %v44 = vld [vmem:[%s2 + $0xc0] sm:$0xff]
    %v45 = vld [vmem:[%s2 + $0xc8] sm:$0xff]
    %v46 = vld [vmem:[%s2 + $0xd0] sm:$0xff]
    %v47 = vld [vmem:[%s2 + $0xd8] sm:$0xff]
    %v48 = vld [vmem:[%s2 + $0xe0] sm:$0xff]
    %v49 = vld [vmem:[%s2 + $0xe8] sm:$0xff]
    %v50 = vld [vmem:[%s2 + $0xf0] sm:$0xff]
    %v51 = vld [vmem:[%s2 + $0xf8] sm:$0xff]
    %v52 = vld [vmem:[%s2 + $0x100] sm:$0xff]
    %v53 = vld [vmem:[%s2 + $0x108] sm:$0xff]
    %v54 = vld [vmem:[%s2 + $0x110] sm:$0xff]
    %v55 = vld [vmem:[%s2 + $0x118] sm:$0xff]
    %v56 = vld [vmem:[%s2 + $0x120] sm:$0xff]
    %v57 = vld [vmem:[%s2 + $0x128] sm:$0xff]
    %v58 = vld [vmem:[%s2 + $0x130] sm:$0xff]
    %v59 = vld [vmem:[%s2 + $0x138] sm:$0xff]
    %v60 = vld [vmem:[%s2 + $0x140] sm:$0xff]
    %v61 = vld [vmem:[%s2 + $0x148] sm:$0xff]
    %v62 = vld [vmem:[%s2 + $0x150] sm:$0xff]
    %v63 = vld [vmem:[%s2 + $0x158] sm:$0xff]
    %v64 = vld [vmem:[%s2 + $0x160] sm:$0xff]
    %v65 = vld [vmem:[%s2 + $0x168] sm:$0xff]
    %v66 = vld [vmem:[%s2 + $0x170] sm:$0xff]
    %v67 = vld [vmem:[%s2 + $0x178] sm:$0xff]
    %v68 = vld [vmem:[%s3] sm:$0xff]
    %v69 = vld [vmem:[%s3 + $0x8] sm:$0xff]
    %v70 = vld [vmem:[%s3 + $0x10] sm:$0xff]
    %v71 = vld [vmem:[%s3 + $0x18] sm:$0xff]
    %v72 = vld [vmem:[%s3 + $0x20] sm:$0xff]
    %v73 = vld [vmem:[%s3 + $0x28] sm:$0xff]
    %v74 = vld [vmem:[%s3 + $0x30] sm:$0xff]
    %v75 = vld [vmem:[%s3 + $0x38] sm:$0xff]
    %v76 = vld [vmem:[%s3 + $0x40] sm:$0xff]
    %v77 = vld [vmem:[%s3 + $0x48] sm:$0xff]
    %v78 = vld [vmem:[%s3 + $0x50] sm:$0xff]
    %v79 = vld [vmem:[%s3 + $0x58] sm:$0xff]
    %v80 = vld [vmem:[%s3 + $0x60] sm:$0xff]
    %v81 = vld [vmem:[%s3 + $0x68] sm:$0xff]
    %v82 = vld [vmem:[%s3 + $0x70] sm:$0xff]
    %v83 = vld [vmem:[%s3 + $0x78] sm:$0xff]
    %v84 = vld [vmem:[%s3 + $0x80] sm:$0xff]
    %v85 = vld [vmem:[%s3 + $0x88] sm:$0xff]
    %v86 = vld [vmem:[%s3 + $0x90] sm:$0xff]
    %v87 = vld [vmem:[%s3 + $0x98] sm:$0xff]
    %v88 = vld [vmem:[%s3 + $0xa0] sm:$0xff]
    %v89 = vld [vmem:[%s3 + $0xa8] sm:$0xff]
    %v90 = vld [vmem:[%s3 + $0xb0] sm:$0xff]
    %v91 = vld [vmem:[%s3 + $0xb8] sm:$0xff]
    %v92 = vld [vmem:[%s3 + $0xc0] sm:$0xff]
    %v93 = vld [vmem:[%s3 + $0xc8] sm:$0xff]
    %v94 = vld [vmem:[%s3 + $0xd0] sm:$0xff]
    %v95 = vld [vmem:[%s3 + $0xd8] sm:$0xff]
    %v96 = vld [vmem:[%s3 + $0xe0] sm:$0xff]
    %v97 = vld [vmem:[%s3 + $0xe8] sm:$0xff]
    %v98 = vld [vmem:[%s3 + $0xf0] sm:$0xff]
    %v99 = vld [vmem:[%s3 + $0xf8] sm:$0xff]
    %v100 = vld [vmem:[%s3 + $0x100] sm:$0xff]
    %v101 = vld [vmem:[%s3 + $0x108] sm:$0xff]
    %v102 = vld [vmem:[%s3 + $0x110] sm:$0xff]
    %v103 = vld [vmem:[%s3 + $0x118] sm:$0xff]
    %v104 = vld [vmem:[%s3 + $0x120] sm:$0xff]
    %v105 = vld [vmem:[%s3 + $0x128] sm:$0xff]
    %v106 = vld [vmem:[%s3 + $0x130] sm:$0xff]
    %v107 = vld [vmem:[%s3 + $0x138] sm:$0xff]
    %v108 = vld [vmem:[%s3 + $0x140] sm:$0xff]
    %v109 = vld [vmem:[%s3 + $0x148] sm:$0xff]
    %v110 = vld [vmem:[%s3 + $0x150] sm:$0xff]
    %v111 = vld [vmem:[%s3 + $0x158] sm:$0xff]
    %v112 = vld [vmem:[%s3 + $0x160] sm:$0xff]
    %v113 = vld [vmem:[%s3 + $0x168] sm:$0xff]
    %v114 = vld [vmem:[%s3 + $0x170] sm:$0xff]
    %v115 = vld [vmem:[%s3 + $0x178] sm:$0xff]
    %116 = vmatprep.subr.mxu0 0.0
    %117 = vmatpush1.xpose.msra.mxu0 %v83
    %118 = vmatprep.subr.mxu0 0.0
    %119 = vmatpush1.xpose.msra.mxu0 %v82
    %120 = vmatprep.subr.mxu0 0.0
    %121 = vmatpush1.xpose.msra.mxu0 %v81
    %122 = vmatprep.subr.mxu0 0.0
    %123 = vmatpush1.xpose.msra.mxu0 %v80
    %124 = vmatprep.subr.mxu0 0.0
    %125 = vmatpush1.xpose.msra.mxu0 %v79
    %126 = vmatprep.subr.mxu0 0.0
    %127 = vmatpush1.xpose.msra.mxu0 %v78
    %128 = vmatprep.subr.mxu0 0.0
    %129 = vmatpush1.xpose.msra.mxu0 %v77
    %130 = vmatprep.subr.mxu0 0.0
    %131 = vmatpush1.xpose.msra.mxu0 %v76
    %132 = vmatprep.subr.mxu0 0.0
    %133 = vmatpush1.xpose.msra.mxu0 %v75
    %134 = vmatprep.subr.mxu0 0.0
    %135 = vmatpush1.xpose.msra.mxu0 %v74
    %136 = vmatprep.subr.mxu0 0.0
    %137 = vmatpush1.xpose.msra.mxu0 %v73
    %138 = vmatprep.subr.mxu0 0.0
    %139 = vmatpush1.xpose.msra.mxu0 %v72
    %140 = vmatprep.subr.mxu0 0.0
    %141 = vmatpush1.xpose.msra.mxu0 %v71
    %142 = vmatprep.subr.mxu0 0.0
    %143 = vmatpush1.xpose.msra.mxu0 %v70
    %144 = vmatprep.subr.mxu0 0.0
    %145 = vmatpush1.xpose.msra.mxu0 %v69
    %146 = vmatprep.subr.mxu0 0.0
    %147 = vmatpush1.xpose.msra.mxu0 %v68
    %148 = vmatprep.subr.mxu0 0.0
    %149 = vmatpush2.xpose.msra.mxu0 %v99
    %150 = vmatprep.subr.mxu0 0.0
    %151 = vmatpush2.xpose.msra.mxu0 %v98
    %152 = vmatprep.subr.mxu0 0.0
    %153 = vmatpush2.xpose.msra.mxu0 %v97
    %154 = vmatprep.subr.mxu0 0.0
    %155 = vmatpush2.xpose.msra.mxu0 %v96
    %156 = vmatprep.subr.mxu0 0.0
    %157 = vmatpush2.xpose.msra.mxu0 %v95
    %158 = vmatprep.subr.mxu0 0.0
    %159 = vmatpush2.xpose.msra.mxu0 %v94
    %160 = vmatprep.subr.mxu0 0.0
    %161 = vmatpush2.xpose.msra.mxu0 %v93
    %162 = vmatprep.subr.mxu0 0.0
    %163 = vmatpush2.xpose.msra.mxu0 %v92
    %164 = vmatprep.subr.mxu0 0.0
    %165 = vmatpush2.xpose.msra.mxu0 %v91
    %166 = vmatprep.subr.mxu0 0.0
    %167 = vmatpush2.xpose.msra.mxu0 %v90
    %168 = vmatprep.subr.mxu0 0.0
    %169 = vmatpush2.xpose.msra.mxu0 %v89
    %170 = vmatprep.subr.mxu0 0.0
    %171 = vmatpush2.xpose.msra.mxu0 %v88
    %172 = vmatprep.subr.mxu0 0.0
    %173 = vmatpush2.xpose.msra.mxu0 %v87
    %174 = vmatprep.subr.mxu0 0.0
    %175 = vmatpush2.xpose.msra.mxu0 %v86
    %176 = vmatprep.subr.mxu0 0.0
    %177 = vmatpush2.xpose.msra.mxu0 %v85
    %178 = vmatprep.subr.mxu0 0.0
    %179 = vmatpush2.xpose.msra.mxu0 %v84
    %180 = vmatprep.mubr.f32.mxu0 0.0
    %181 = vmatmul.mubr.f32.gmra.mxu0 %v19
    %v182 = vpop.f32.mrf.mxu0
    %v183 = vadd.f32 0.0, %v182
    %v184 = vpop.f32.mrf.mxu0
    %v185 = vadd.f32 0.0, %v184
    %186 = vdwg.mxu0
    %187 = vmatprep.subr.mxu0 0.0
    %188 = vmatpush1.xpose.msra.mxu0 %v115
    %189 = vmatprep.subr.mxu0 0.0
    %190 = vmatpush1.xpose.msra.mxu0 %v114
    %191 = vmatprep.subr.mxu0 0.0
    %192 = vmatpush1.xpose.msra.mxu0 %v113
    %193 = vmatprep.subr.mxu0 0.0
    %194 = vmatpush1.xpose.msra.mxu0 %v112
    %195 = vmatprep.subr.mxu0 0.0
    %196 = vmatpush1.xpose.msra.mxu0 %v111
    %197 = vmatprep.subr.mxu0 0.0
    %198 = vmatpush1.xpose.msra.mxu0 %v110
    %199 = vmatprep.subr.mxu0 0.0
    %200 = vmatpush1.xpose.msra.mxu0 %v109
    %201 = vmatprep.subr.mxu0 0.0
    %202 = vmatpush1.xpose.msra.mxu0 %v108
    %203 = vmatprep.subr.mxu0 0.0
    %204 = vmatpush1.xpose.msra.mxu0 %v107
    %205 = vmatprep.subr.mxu0 0.0
    %206 = vmatpush1.xpose.msra.mxu0 %v106
    %207 = vmatprep.subr.mxu0 0.0
    %208 = vmatpush1.xpose.msra.mxu0 %v105
    %209 = vmatprep.subr.mxu0 0.0
    %210 = vmatpush1.xpose.msra.mxu0 %v104
    %211 = vmatprep.subr.mxu0 0.0
    %212 = vmatpush1.xpose.msra.mxu0 %v103
    %213 = vmatprep.subr.mxu0 0.0
    %214 = vmatpush1.xpose.msra.mxu0 %v102
    %215 = vmatprep.subr.mxu0 0.0
    %216 = vmatpush1.xpose.msra.mxu0 %v101
    %217 = vmatprep.subr.mxu0 0.0
    %218 = vmatpush1.xpose.msra.mxu0 %v100
    %219 = vmatprep.subr.mxu0 0.0
    %220 = vmatpush2.xpose.msra.mxu0 0.0
    %221 = vmatprep.subr.mxu0 0.0
    %222 = vmatpush2.xpose.msra.mxu0 0.0
    %223 = vmatprep.subr.mxu0 0.0
    %224 = vmatpush2.xpose.msra.mxu0 0.0
    %225 = vmatprep.subr.mxu0 0.0
    %226 = vmatpush2.xpose.msra.mxu0 0.0
    %227 = vmatprep.subr.mxu0 0.0
    %228 = vmatpush2.xpose.msra.mxu0 0.0
    %229 = vmatprep.subr.mxu0 0.0
    %230 = vmatpush2.xpose.msra.mxu0 0.0
    %231 = vmatprep.subr.mxu0 0.0
    %232 = vmatpush2.xpose.msra.mxu0 0.0
    %233 = vmatprep.subr.mxu0 0.0
    %234 = vmatpush2.xpose.msra.mxu0 0.0
    %235 = vmatprep.subr.mxu0 0.0
    %236 = vmatpush2.xpose.msra.mxu0 0.0
    %237 = vmatprep.subr.mxu0 0.0
    %238 = vmatpush2.xpose.msra.mxu0 0.0
    %239 = vmatprep.subr.mxu0 0.0
    %240 = vmatpush2.xpose.msra.mxu0 0.0
    %241 = vmatprep.subr.mxu0 0.0
    %242 = vmatpush2.xpose.msra.mxu0 0.0
    %243 = vmatprep.subr.mxu0 0.0
    %244 = vmatpush2.xpose.msra.mxu0 0.0
    %245 = vmatprep.subr.mxu0 0.0
    %246 = vmatpush2.xpose.msra.mxu0 0.0
    %247 = vmatprep.subr.mxu0 0.0
    %248 = vmatpush2.xpose.msra.mxu0 0.0
    %249 = vmatprep.subr.mxu0 0.0
    %250 = vmatpush2.xpose.msra.mxu0 0.0
    %251 = vmatprep.mubr.f32.mxu0 0.0
    %252 = vmatmul.mubr.f32.gmra.mxu0 %v19
    %v253 = vpop.f32.mrf.mxu0
    %v254 = vadd.f32 0.0, %v253
    %v255 = vpop.f32.mrf.mxu0
    %256 = vdwg.mxu0
    %257 = vmatprep.subr.mxu0 0.0
    %258 = vmatpush1.xpose.msra.mxu0 %v35
    %259 = vmatprep.subr.mxu0 0.0
    %260 = vmatpush1.xpose.msra.mxu0 %v34
    %261 = vmatprep.subr.mxu0 0.0
    %262 = vmatpush1.xpose.msra.mxu0 %v33
    %263 = vmatprep.subr.mxu0 0.0
    %264 = vmatpush1.xpose.msra.mxu0 %v32
    %265 = vmatprep.subr.mxu0 0.0
    %266 = vmatpush1.xpose.msra.mxu0 %v31
    %267 = vmatprep.subr.mxu0 0.0
    %268 = vmatpush1.xpose.msra.mxu0 %v30
    %269 = vmatprep.subr.mxu0 0.0
    %270 = vmatpush1.xpose.msra.mxu0 %v29
    %271 = vmatprep.subr.mxu0 0.0
    %272 = vmatpush1.xpose.msra.mxu0 %v28
    %273 = vmatprep.subr.mxu0 0.0
    %274 = vmatpush1.xpose.msra.mxu0 %v27
    %275 = vmatprep.subr.mxu0 0.0
    %276 = vmatpush1.xpose.msra.mxu0 %v26
    %277 = vmatprep.subr.mxu0 0.0
    %278 = vmatpush1.xpose.msra.mxu0 %v25
    %279 = vmatprep.subr.mxu0 0.0
    %280 = vmatpush1.xpose.msra.mxu0 %v24
    %281 = vmatprep.subr.mxu0 0.0
    %282 = vmatpush1.xpose.msra.mxu0 %v23
    %283 = vmatprep.subr.mxu0 0.0
    %284 = vmatpush1.xpose.msra.mxu0 %v22
    %285 = vmatprep.subr.mxu0 0.0
    %286 = vmatpush1.xpose.msra.mxu0 %v21
    %287 = vmatprep.subr.mxu0 0.0
    %288 = vmatpush1.xpose.msra.mxu0 %v20
    %289 = vmatprep.subr.mxu0 0.0
    %290 = vmatpush2.xpose.msra.mxu0 %v51
    %291 = vmatprep.subr.mxu0 0.0
    %292 = vmatpush2.xpose.msra.mxu0 %v50
    %293 = vmatprep.subr.mxu0 0.0
    %294 = vmatpush2.xpose.msra.mxu0 %v49
    %295 = vmatprep.subr.mxu0 0.0
    %296 = vmatpush2.xpose.msra.mxu0 %v48
    %297 = vmatprep.subr.mxu0 0.0
    %298 = vmatpush2.xpose.msra.mxu0 %v47
    %299 = vmatprep.subr.mxu0 0.0
    %300 = vmatpush2.xpose.msra.mxu0 %v46
    %301 = vmatprep.subr.mxu0 0.0
    %302 = vmatpush2.xpose.msra.mxu0 %v45
    %303 = vmatprep.subr.mxu0 0.0
    %304 = vmatpush2.xpose.msra.mxu0 %v44
    %305 = vmatprep.subr.mxu0 0.0
    %306 = vmatpush2.xpose.msra.mxu0 %v43
    %307 = vmatprep.subr.mxu0 0.0
    %308 = vmatpush2.xpose.msra.mxu0 %v42
    %309 = vmatprep.subr.mxu0 0.0
    %310 = vmatpush2.xpose.msra.mxu0 %v41
    %311 = vmatprep.subr.mxu0 0.0
    %312 = vmatpush2.xpose.msra.mxu0 %v40
    %313 = vmatprep.subr.mxu0 0.0
    %314 = vmatpush2.xpose.msra.mxu0 %v39
    %315 = vmatprep.subr.mxu0 0.0
    %316 = vmatpush2.xpose.msra.mxu0 %v38
    %317 = vmatprep.subr.mxu0 0.0
    %318 = vmatpush2.xpose.msra.mxu0 %v37
    %319 = vmatprep.subr.mxu0 0.0
    %320 = vmatpush2.xpose.msra.mxu0 %v36
    %321 = vmatprep.mubr.f32.mxu0 0.0
    %322 = vmatmul.mubr.f32.gmra.mxu0 %v18
    %v323 = vpop.f32.mrf.mxu0
    %v324 = vadd.f32 %v183, %v323
    %v325 = vpop.f32.mrf.mxu0
    %v326 = vadd.f32 %v185, %v325
    %327 = vdwg.mxu0
    %328 = vmatprep.subr.mxu0 0.0
    %329 = vmatpush1.xpose.msra.mxu0 %v67
    %330 = vmatprep.subr.mxu0 0.0
    %331 = vmatpush1.xpose.msra.mxu0 %v66
    %332 = vmatprep.subr.mxu0 0.0
    %333 = vmatpush1.xpose.msra.mxu0 %v65
    %334 = vmatprep.subr.mxu0 0.0
    %335 = vmatpush1.xpose.msra.mxu0 %v64
    %336 = vmatprep.subr.mxu0 0.0
    %337 = vmatpush1.xpose.msra.mxu0 %v63
    %338 = vmatprep.subr.mxu0 0.0
    %339 = vmatpush1.xpose.msra.mxu0 %v62
    %340 = vmatprep.subr.mxu0 0.0
    %341 = vmatpush1.xpose.msra.mxu0 %v61
    %342 = vmatprep.subr.mxu0 0.0
    %343 = vmatpush1.xpose.msra.mxu0 %v60
    %344 = vmatprep.subr.mxu0 0.0
    %345 = vmatpush1.xpose.msra.mxu0 %v59
    %346 = vmatprep.subr.mxu0 0.0
    %347 = vmatpush1.xpose.msra.mxu0 %v58
    %348 = vmatprep.subr.mxu0 0.0
    %349 = vmatpush1.xpose.msra.mxu0 %v57
    %350 = vmatprep.subr.mxu0 0.0
    %351 = vmatpush1.xpose.msra.mxu0 %v56
    %352 = vmatprep.subr.mxu0 0.0
    %353 = vmatpush1.xpose.msra.mxu0 %v55
    %354 = vmatprep.subr.mxu0 0.0
    %355 = vmatpush1.xpose.msra.mxu0 %v54
    %356 = vmatprep.subr.mxu0 0.0
    %357 = vmatpush1.xpose.msra.mxu0 %v53
    %358 = vmatprep.subr.mxu0 0.0
    %359 = vmatpush1.xpose.msra.mxu0 %v52
    %360 = vmatprep.subr.mxu0 0.0
    %361 = vmatpush2.xpose.msra.mxu0 0.0
    %362 = vmatprep.subr.mxu0 0.0
    %363 = vmatpush2.xpose.msra.mxu0 0.0
    %364 = vmatprep.subr.mxu0 0.0
    %365 = vmatpush2.xpose.msra.mxu0 0.0
    %366 = vmatprep.subr.mxu0 0.0
    %367 = vmatpush2.xpose.msra.mxu0 0.0
    %368 = vmatprep.subr.mxu0 0.0
    %369 = vmatpush2.xpose.msra.mxu0 0.0
    %370 = vmatprep.subr.mxu0 0.0
    %371 = vmatpush2.xpose.msra.mxu0 0.0
    %372 = vmatprep.subr.mxu0 0.0
    %373 = vmatpush2.xpose.msra.mxu0 0.0
    %374 = vmatprep.subr.mxu0 0.0
    %375 = vmatpush2.xpose.msra.mxu0 0.0
    %376 = vmatprep.subr.mxu0 0.0
    %377 = vmatpush2.xpose.msra.mxu0 0.0
    %378 = vmatprep.subr.mxu0 0.0
    %379 = vmatpush2.xpose.msra.mxu0 0.0
    %380 = vmatprep.subr.mxu0 0.0
    %381 = vmatpush2.xpose.msra.mxu0 0.0
    %382 = vmatprep.subr.mxu0 0.0
    %383 = vmatpush2.xpose.msra.mxu0 0.0
    %384 = vmatprep.subr.mxu0 0.0
    %385 = vmatpush2.xpose.msra.mxu0 0.0
    %386 = vmatprep.subr.mxu0 0.0
    %387 = vmatpush2.xpose.msra.mxu0 0.0
    %388 = vmatprep.subr.mxu0 0.0
    %389 = vmatpush2.xpose.msra.mxu0 0.0
    %390 = vmatprep.subr.mxu0 0.0
    %391 = vmatpush2.xpose.msra.mxu0 0.0
    %392 = vmatprep.mubr.f32.mxu0 0.0
    %393 = vmatmul.mubr.f32.gmra.mxu0 %v18
    %v394 = vpop.f32.mrf.mxu0
    %v395 = vadd.f32 %v254, %v394
    %v396 = vpop.f32.mrf.mxu0
    %397 = vdwg.mxu0
    %v398 = vxor.u32 %v324, 2147483648
    %v399 = vxor.u32 %v326, 2147483648
    %v400 = vxor.u32 %v395, 2147483648
    %v401 = vmul.f32 %v398, 1.442695
    %v402 = vpow.pop %v401
    %v403 = vmul.f32 %v399, 1.442695
    %v404 = vpow.pop %v403
    %v405 = vmul.f32 %v400, 1.442695
    %v406 = vpow.pop %v405
    %v407 = vadd.f32 %v402, 1.0
    %v408 = vadd.f32 %v404, 1.0
    %v409 = vadd.f32 %v406, 1.0
    %v410 = vrcp.pop %v407
    %v411 = vmul.f32 1.0, %v410
    %v412 = vrcp.pop %v408
    %v413 = vmul.f32 1.0, %v412
    %v414 = vrcp.pop %v409
    %v415 = vmul.f32 1.0, %v414
    %416 = vst [vmem:[#allocation2] sm:$0xff] %v411
    %417 = vst [vmem:[#allocation2 + $0x8] sm:$0xff] %v413
    %418 = vst [vmem:[#allocation2 + $0x10] sm:$0xff] %v415
    // Predicated region
    $region18: #{complex_forward.1} parent=1 // pred_check
      _
    $region19: #{complex_forward.1} parent=1 // pred_check_branch
      %420 = sbr.rel (0) target = $region21
    $region20: #{complex_forward.1} parent=1 // pred_region
      %s422 = ssub.s32 384, 384
      %423 = vsyncadd [#allocation3], %s422
      %s425 = sshll.u32 [#allocation2], 4
      %s426 = int_to_ptr.vmem [resolvable:$true] %s425
      %428 = dma.vmem_to_hbm [thread:$0]  %s426, 384, %s4, [#allocation3]
    $region21: #{complex_forward.1} parent=1 // pred_fallthru
      _
    // Predicated region
    $region22: #{complex_forward.1} parent=1 // pred_check
      _
    $region23: #{complex_forward.1} parent=1 // pred_check_branch
      %430 = sbr.rel (0) target = $region25
    $region24: #{complex_forward.1} parent=1 // pred_region
      %431 = dma.done [#allocation3], 384
    $region25: #{complex_forward.1} parent=1 // pred_fallthru
      _
    %432 = vsyncpa [#allocation3], 1

</llo_original>
